<compile_context>
chip_gen: v7x
topology: tpu7x:2x2x1
jax: 0.10.0
libtpu: 0.0.40
codegen_flags: <defaults>
</compile_context>

<pallas_src>
import jax
import jax.numpy as jnp
from jax.experimental import pallas as pl
from jax.experimental.pallas import tpu as pltpu


def _mim_loss_kernel(pred_ref, target_ref, mask_ref, abs_ref, msk_ref):
    # abs_ref / msk_ref: (acc_rows, S) f32 accumulators, resident across the
    # reduction ("arbitrary") grid axis; init on the first step of each split.
    @pl.when(pl.program_id(1) == 0)
    def _init():
        abs_ref[...] = jnp.zeros_like(abs_ref)
        msk_ref[...] = jnp.zeros_like(msk_ref)

    tile_rows = pred_ref.shape[0]
    acc_rows = abs_ref.shape[0]
    n_groups = tile_rows // acc_rows  # static

    a_acc = abs_ref[...]
    m_acc = msk_ref[...]
    # Static unroll over row groups: small (acc_rows, S) temporaries, pure VPU
    # elementwise work (sub, mul, abs, add); no per-step XLU scalar reduce.
    for g in range(n_groups):
        rows = pl.ds(g * acc_rows, acc_rows)
        m = mask_ref[rows, :].astype(jnp.float32)
        p = pred_ref[rows, :].astype(jnp.float32)
        t = target_ref[rows, :].astype(jnp.float32)
        a_acc = a_acc + jnp.abs((p - t) * m)   # |p*m - t*m| == |(p-t)*m|
        m_acc = m_acc + m
    abs_ref[...] = a_acc
    msk_ref[...] = m_acc


def _choose_tile_rows(B: int, S: int, bytes_per_row: int) -> int:
    # Keep the three live input tiles around ~4 MiB per grid step (~8 MiB with
    # double buffering) -> safe for v5e's 16 MiB default scoped VMEM and v7x's
    # smaller physical VMEM, while still big enough to hit the HBM roofline.
    budget = 4 * 1024 * 1024
    max_rows = max(8, budget // max(1, bytes_per_row))
    r = min((max_rows // 8) * 8, (B // 8) * 8)
    while r >= 8:
        if B % r == 0:
            return r
        r -= 8
    # No multiple-of-8 divisor (or B < 8): fall back to a single full-batch
    # row tile (block dim == full dim is always a legal BlockSpec).
    return B


def mim_loss(pred: jax.Array, target: jax.Array, mask: jax.Array,
             *, tile_rows: int | None = None) -> jax.Array:
    assert pred.shape == target.shape == mask.shape
    B, S = pred.shape

    if tile_rows is None:
        bytes_per_row = S * (pred.dtype.itemsize + target.dtype.itemsize
                             + mask.dtype.itemsize)
        tile_rows = _choose_tile_rows(B, S, bytes_per_row)
    assert B % tile_rows == 0
    assert tile_rows % 8 == 0 or tile_rows == B

    n_tiles = B // tile_rows
    # Two independent halves for the v7x dual-TensorCore case (no-op on
    # single-core chips); only when the tiles split evenly.
    n_splits = 2 if (n_tiles >= 2 and n_tiles % 2 == 0) else 1
    tiles_per_split = n_tiles // n_splits

    acc_rows = 8 if tile_rows % 8 == 0 else tile_rows

    in_spec = pl.BlockSpec((tile_rows, S),
                           lambda s, r: (s * tiles_per_split + r, 0))
    out_spec = pl.BlockSpec((None, acc_rows, S), lambda s, r: (s, 0, 0))

    abs_part, msk_part = pl.pallas_call(
        _mim_loss_kernel,
        out_shape=(
            jax.ShapeDtypeStruct((n_splits, acc_rows, S), jnp.float32),
            jax.ShapeDtypeStruct((n_splits, acc_rows, S), jnp.float32),
        ),
        grid=(n_splits, tiles_per_split),
        in_specs=[in_spec, in_spec, in_spec],
        out_specs=(out_spec, out_spec),
        compiler_params=pltpu.CompilerParams(
            dimension_semantics=("parallel", "arbitrary")),
    )(pred, target, mask)

    # Tiny final reduce / divide / guard in plain JAX (a few KiB at most).
    abs_sum = jnp.sum(abs_part)
    mask_sum = jnp.sum(msk_part)
    loss = abs_sum / jnp.float32(B * S)
    # mask.sum() == 0  ->  return 0 (PyTorch returns torch.Tensor([0]))
    return jnp.where(mask_sum == 0.0, jnp.float32(0.0), loss)


def _mim_loss_ref(pred, target, mask):
    # Pure-JAX reference for correctness checking (f32 math).
    p = pred.astype(jnp.float32)
    t = target.astype(jnp.float32)
    m = mask.astype(jnp.float32)
    loss = jnp.mean(jnp.abs(p * m - t * m))
    return jnp.where(jnp.sum(m) == 0.0, jnp.float32(0.0), loss)


if __name__ == "__main__":
    key = jax.random.PRNGKey(0)
    kp, kt, km = jax.random.split(key, 3)

    # Small demo shape consistent with (batch_size, sample_size).
    B, S = 2, 128
    pred = jax.random.normal(kp, (B, S), dtype=jnp.float32)
    target = jax.random.normal(kt, (B, S), dtype=jnp.float32)
    mask = (jax.random.uniform(km, (B, S)) > 0.5).astype(jnp.float32)

    out = jax.block_until_ready(mim_loss(pred, target, mask))
    ref = jax.block_until_ready(_mim_loss_ref(pred, target, mask))
    assert jnp.allclose(out, ref, rtol=1e-5, atol=1e-6), (out, ref)

    # All-zero-mask branch -> 0.
    out0 = jax.block_until_ready(mim_loss(pred, target, jnp.zeros((B, S), jnp.float32)))
    assert out0 == 0.0

    # Multi-row-group tile (exercises the in-kernel row-group fold).
    B1, S1 = 32, 128
    k1p, k1t, k1m = jax.random.split(jax.random.PRNGKey(2), 3)
    pred1 = jax.random.normal(k1p, (B1, S1), dtype=jnp.float32)
    target1 = jax.random.normal(k1t, (B1, S1), dtype=jnp.float32)
    mask1 = (jax.random.uniform(k1m, (B1, S1)) > 0.5).astype(jnp.float32)
    out1 = jax.block_until_ready(mim_loss(pred1, target1, mask1))
    ref1 = jax.block_until_ready(_mim_loss_ref(pred1, target1, mask1))
    assert jnp.allclose(out1, ref1, rtol=1e-5, atol=1e-6), (out1, ref1)

    # Multi-tile grid + 2-way split + bf16 inputs (in-kernel cast path).
    B2, S2 = 64, 256
    k2p, k2t, k2m = jax.random.split(jax.random.PRNGKey(1), 3)
    pred2 = jax.random.normal(k2p, (B2, S2), dtype=jnp.bfloat16)
    target2 = jax.random.normal(k2t, (B2, S2), dtype=jnp.bfloat16)
    mask2 = (jax.random.uniform(k2m, (B2, S2)) > 0.5).astype(jnp.bfloat16)
    out2 = jax.block_until_ready(mim_loss(pred2, target2, mask2, tile_rows=8))
    ref2 = jax.block_until_ready(_mim_loss_ref(pred2, target2, mask2))
    assert jnp.allclose(out2, ref2, rtol=1e-3, atol=1e-4), (out2, ref2)

    print("KERNEL_OK")
</pallas_src>

<mosaic_0001>
module attributes {stable_mosaic.version = 11 : i64} {
  func.func @_mim_loss_kernel(%arg0: i32, %arg1: i32, %arg2: memref<2x128xf32, #tpu.memory_space<vmem>>, %arg3: memref<2x128xf32, #tpu.memory_space<vmem>>, %arg4: memref<2x128xf32, #tpu.memory_space<vmem>>, %arg5: memref<1x2x128xf32, #tpu.memory_space<vmem>>, %arg6: memref<1x2x128xf32, #tpu.memory_space<vmem>>) attributes {dimension_semantics = [#tpu.dimension_semantics<parallel>, #tpu.dimension_semantics<arbitrary>], iteration_bounds = array<i64: 1, 1>, scalar_prefetch = 0 : i64, scratch_operands = 0 : i64, tpu.core_type = #tpu.core_type<tc>, window_params = [{transform_indices = @transform_0, window_bounds = array<i64: 2, 128>}, {transform_indices = @transform_1, window_bounds = array<i64: 2, 128>}, {transform_indices = @transform_2, window_bounds = array<i64: 2, 128>}, {transform_indices = @transform_3, window_bounds = array<i64: 1, 2, 128>}, {transform_indices = @transform_4, window_bounds = array<i64: 1, 2, 128>}]} {
    %c0_i32 = arith.constant 0 : i32
    %0 = arith.cmpi eq, %arg1, %c0_i32 : i32
    %1 = arith.extui %0 : i1 to i32
    %c0_i32_0 = arith.constant 0 : i32
    %2 = arith.cmpi ne, %1, %c0_i32_0 : i32
    scf.if %2 {
      %cst = arith.constant 0.000000e+00 : f32
      %21 = vector.broadcast %cst : f32 to vector<2x128xf32>
      %c0_18 = arith.constant 0 : index
      %c0_19 = arith.constant 0 : index
      %c0_20 = arith.constant 0 : index
      %22 = vector.load %arg5[%c0_18, %c0_19, %c0_20] : memref<1x2x128xf32, #tpu.memory_space<vmem>>, vector<1x2x128xf32>
      %23 = vector.shape_cast %22 : vector<1x2x128xf32> to vector<2x128xf32>
      %24 = vector.shape_cast %21 : vector<2x128xf32> to vector<1x2x128xf32>
      tpu.vector_store %arg5[%c0_18, %c0_19, %c0_20], %24 {strides = array<i32>} : memref<1x2x128xf32, #tpu.memory_space<vmem>>, vector<1x2x128xf32>,
      %cst_21 = arith.constant 0.000000e+00 : f32
      %25 = vector.broadcast %cst_21 : f32 to vector<2x128xf32>
      %c0_22 = arith.constant 0 : index
      %c0_23 = arith.constant 0 : index
      %c0_24 = arith.constant 0 : index
      %26 = vector.load %arg6[%c0_22, %c0_23, %c0_24] : memref<1x2x128xf32, #tpu.memory_space<vmem>>, vector<1x2x128xf32>
      %27 = vector.shape_cast %26 : vector<1x2x128xf32> to vector<2x128xf32>
      %28 = vector.shape_cast %25 : vector<2x128xf32> to vector<1x2x128xf32>
      tpu.vector_store %arg6[%c0_22, %c0_23, %c0_24], %28 {strides = array<i32>} : memref<1x2x128xf32, #tpu.memory_space<vmem>>, vector<1x2x128xf32>,
    } else {
    }
    %c0 = arith.constant 0 : index
    %c0_1 = arith.constant 0 : index
    %c0_2 = arith.constant 0 : index
    %3 = vector.load %arg5[%c0, %c0_1, %c0_2] : memref<1x2x128xf32, #tpu.memory_space<vmem>>, vector<1x2x128xf32>
    %4 = vector.shape_cast %3 : vector<1x2x128xf32> to vector<2x128xf32>
    %c0_3 = arith.constant 0 : index
    %c0_4 = arith.constant 0 : index
    %c0_5 = arith.constant 0 : index
    %5 = vector.load %arg6[%c0_3, %c0_4, %c0_5] : memref<1x2x128xf32, #tpu.memory_space<vmem>>, vector<1x2x128xf32>
    %6 = vector.shape_cast %5 : vector<1x2x128xf32> to vector<2x128xf32>
    %c0_6 = arith.constant 0 : index
    %c0_7 = arith.constant 0 : index
    %7 = vector.load %arg4[%c0_6, %c0_7] : memref<2x128xf32, #tpu.memory_space<vmem>>, vector<2x128xf32>
    %c0_8 = arith.constant 0 : index
    %c0_9 = arith.constant 0 : index
    %8 = vector.load %arg2[%c0_8, %c0_9] : memref<2x128xf32, #tpu.memory_space<vmem>>, vector<2x128xf32>
    %c0_10 = arith.constant 0 : index
    %c0_11 = arith.constant 0 : index
    %9 = vector.load %arg3[%c0_10, %c0_11] : memref<2x128xf32, #tpu.memory_space<vmem>>, vector<2x128xf32>
    %10 = arith.subf %8, %9 : vector<2x128xf32>
    %11 = arith.mulf %10, %7 : vector<2x128xf32>
    %12 = math.absf %11 : vector<2x128xf32>
    %13 = arith.addf %4, %12 : vector<2x128xf32>
    %14 = arith.addf %6, %7 : vector<2x128xf32>
    %c0_12 = arith.constant 0 : index
    %c0_13 = arith.constant 0 : index
    %c0_14 = arith.constant 0 : index
    %15 = vector.load %arg5[%c0_12, %c0_13, %c0_14] : memref<1x2x128xf32, #tpu.memory_space<vmem>>, vector<1x2x128xf32>
    %16 = vector.shape_cast %15 : vector<1x2x128xf32> to vector<2x128xf32>
    %17 = vector.shape_cast %13 : vector<2x128xf32> to vector<1x2x128xf32>
    tpu.vector_store %arg5[%c0_12, %c0_13, %c0_14], %17 {strides = array<i32>} : memref<1x2x128xf32, #tpu.memory_space<vmem>>, vector<1x2x128xf32>,
    %c0_15 = arith.constant 0 : index
    %c0_16 = arith.constant 0 : index
    %c0_17 = arith.constant 0 : index
    %18 = vector.load %arg6[%c0_15, %c0_16, %c0_17] : memref<1x2x128xf32, #tpu.memory_space<vmem>>, vector<1x2x128xf32>
    %19 = vector.shape_cast %18 : vector<1x2x128xf32> to vector<2x128xf32>
    %20 = vector.shape_cast %14 : vector<2x128xf32> to vector<1x2x128xf32>
    tpu.vector_store %arg6[%c0_15, %c0_16, %c0_17], %20 {strides = array<i32>} : memref<1x2x128xf32, #tpu.memory_space<vmem>>, vector<1x2x128xf32>,
    return
  }
  func.func @transform_0(%arg0: i32, %arg1: i32) -> (i32, i32) {
    %c1_i32 = arith.constant 1 : i32
    %0 = arith.muli %arg0, %c1_i32 : i32
    %1 = arith.addi %0, %arg1 : i32
    %c0_i32 = arith.constant 0 : i32
    %c0_i32_0 = arith.constant 0 : i32
    return %1, %c0_i32 : i32, i32
  }
  func.func @transform_1(%arg0: i32, %arg1: i32) -> (i32, i32) {
    %c1_i32 = arith.constant 1 : i32
    %0 = arith.muli %arg0, %c1_i32 : i32
    %1 = arith.addi %0, %arg1 : i32
    %c0_i32 = arith.constant 0 : i32
    %c0_i32_0 = arith.constant 0 : i32
    return %1, %c0_i32 : i32, i32
  }
  func.func @transform_2(%arg0: i32, %arg1: i32) -> (i32, i32) {
    %c1_i32 = arith.constant 1 : i32
    %0 = arith.muli %arg0, %c1_i32 : i32
    %1 = arith.addi %0, %arg1 : i32
    %c0_i32 = arith.constant 0 : i32
    %c0_i32_0 = arith.constant 0 : i32
    return %1, %c0_i32 : i32, i32
  }
  func.func @transform_3(%arg0: i32, %arg1: i32) -> (i32, i32, i32) {
    %c0_i32 = arith.constant 0 : i32
    %c0_i32_0 = arith.constant 0 : i32
    %c0_i32_1 = arith.constant 0 : i32
    return %arg0, %c0_i32, %c0_i32_0 : i32, i32, i32
  }
  func.func @transform_4(%arg0: i32, %arg1: i32) -> (i32, i32, i32) {
    %c0_i32 = arith.constant 0 : i32
    %c0_i32_0 = arith.constant 0 : i32
    %c0_i32_1 = arith.constant 0 : i32
    return %arg0, %c0_i32, %c0_i32_0 : i32, i32, i32
  }
}

</mosaic_0001>

<llo_original>
// kernel: tpu_custom_call.1
$region0: #{tpu_custom_call.1}
  #allocation0 [shape = 'u32[]', space=smem, size = 0x4, offset = 0x4, fixed_abs, tag = 'smem constant byte address 0x4 - core index']
  #allocation1 [shape = 'u32[144,128]{1,0:T(1,128)}', space=vmem, size = 0x12000, scoped, tag = 'internal scratch']
  %s0 = inlined_call_operand.hbm [shape: f32[2,128], index: 0, kind: input, shape index: {}]
  %s1 = inlined_call_operand.vmem [shape: f32[2,128], index: 1, kind: input, shape index: {}]
  %s2 = inlined_call_operand.vmem [shape: f32[2,128], index: 2, kind: input, shape index: {}]
  %s3 = inlined_call_operand.hbm [shape: f32[1,2,128], index: 3, kind: output, shape index: {0}]
  %s4 = inlined_call_operand.hbm [shape: f32[1,2,128], index: 4, kind: output, shape index: {1}]
  %5 = xla_tuple %s3, %s4
  %s6 = sld [smem:[#allocation0]]
  $region38: #{tpu_custom_call.1} parent=0
    _
  %s8 = ssub.s32 1, %s6
  %s9 = scalar_select 0, %s8, %s6
  $region1: #{tpu_custom_call.1} parent=0
    #allocation2 [shape = 'u8[1024]{0}', space=vmem, size = 0x400, scoped, tag = 'input window, operand 0, single buffered']
    #allocation3 [shape = 's32[1]{0}', space=sflag, size = 0x4, scoped, tag = 'scoped memory for tpu_custom_call.1']
    #allocation4 [shape = 's32[1]{0}', space=sflag, size = 0x4, scoped, tag = 'scoped memory for tpu_custom_call.1']
    #allocation5 [shape = 'u8[1024]{0}', space=vmem, size = 0x400, scoped, tag = 'output window, operand 0, single buffered']
    #allocation6 [shape = 'u8[1024]{0}', space=vmem, size = 0x400, scoped, tag = 'output window, operand 1, single buffered']
    #allocation7 [shape = 's32[1]{0}', space=sflag, size = 0x4, scoped, tag = 'scoped memory for tpu_custom_call.1']
    %10 = vsyncpa [#allocation3], 0
    %11 = vsyncpa [#allocation4], 0
    %12 = vsyncpa [#allocation7], 0
    // Predicated region
    $region2: #{tpu_custom_call.1} parent=1 // pred_check
      _
    $region3: #{tpu_custom_call.1} parent=1 // pred_check_branch
      %14 = sbr.rel (0) target = $region5
    $region4: #{tpu_custom_call.1} parent=1 // pred_region
      %s15 = sadd.s32 0, 0
      %s17 = ssub.s32 32, 32
      %18 = vsyncadd [#allocation3], %s17
      %s19 = smul.addr %s15, 32
      %s20 = scalar_lea.hbm %s0, %s19
      %s22 = sshll.u32 [#allocation2], 4
      %s23 = int_to_ptr.vmem [resolvable:$true] %s22
      %25 = dma.hbm_to_vmem [thread:$0]  %s20, 32, %s23, [#allocation3]
    $region5: #{tpu_custom_call.1} parent=1 // pred_fallthru
      _
    // Predicated region
    $region6: #{tpu_custom_call.1} parent=1 // pred_check
      _
    $region7: #{tpu_custom_call.1} parent=1 // pred_check_branch
      %27 = sbr.rel (0) target = $region9
    $region8: #{tpu_custom_call.1} parent=1 // pred_region
      %s28 = sadd.s32 0, 0
      %p29 = scmp.lt.s32.totalorder %s28, 0
      %s30 = scalar_select %p29, %s28, 0
      %s31 = smul.addr %s30, 2
      %s32 = scalar_lea.vmem %s1, %s31
      %s33 = sadd.s32 0, 0
    $region9: #{tpu_custom_call.1} parent=1 // pred_fallthru
      _
    // Predicated region
    $region10: #{tpu_custom_call.1} parent=1 // pred_check
      _
    $region11: #{tpu_custom_call.1} parent=1 // pred_check_branch
      %35 = sbr.rel (0) target = $region13
    $region12: #{tpu_custom_call.1} parent=1 // pred_region
      %s36 = sadd.s32 0, 0
      %p37 = scmp.lt.s32.totalorder %s36, 0
      %s38 = scalar_select %p37, %s36, 0
      %s39 = smul.addr %s38, 2
      %s40 = scalar_lea.vmem %s2, %s39
      %s41 = sadd.s32 0, 0
    $region13: #{tpu_custom_call.1} parent=1 // pred_fallthru
      _
    // Predicated region
    $region14: #{tpu_custom_call.1} parent=1 // pred_check
      _
    $region15: #{tpu_custom_call.1} parent=1 // pred_check_branch
      %43 = sbr.rel (0) target = $region17
    $region16: #{tpu_custom_call.1} parent=1 // pred_region
      %44 = dma.done [#allocation3], 32
    $region17: #{tpu_custom_call.1} parent=1 // pred_fallthru
      _
    %s45 = sadd.s32 0, 0
    %p46 = scmp.lt.s32.totalorder %s45, 0
    %s47 = scalar_select %p46, %s45, 0
    %s48 = smul.addr %s47, 2
    %s49 = scalar_lea.vmem %s1, %s48
    %s50 = sadd.s32 0, 0
    %p51 = scmp.lt.s32.totalorder %s50, 0
    %s52 = scalar_select %p51, %s50, 0
    %s53 = smul.addr %s52, 2
    %s54 = scalar_lea.vmem %s2, %s53
    %s55 = sadd.s32 0, 0
    %s56 = sadd.s32 0, 0
    %p57 = scmp.lt.s32.totalorder %s56, 0
    %s58 = scalar_select %p57, %s56, 0
    %s59 = smul.addr %s58, 2
    %s60 = scalar_lea.vmem %s1, %s59
    %s61 = sadd.s32 0, 0
    %s62 = sadd.s32 0, 0
    %p63 = scmp.lt.s32.totalorder %s62, 0
    %s64 = scalar_select %p63, %s62, 0
    %s65 = smul.addr %s64, 2
    %s66 = scalar_lea.vmem %s2, %s65
    %s67 = sadd.s32 0, 0
    %p68 = scmp.eq.s32.totalorder 0, 0
    // Predicated region
    $region18: #{tpu_custom_call.1} parent=1 // pred_check
      %p69 = pneg %p68
    $region19: #{tpu_custom_call.1} parent=1 // pred_check_branch
      %71 = sbr.rel (%p69) target = $region21
    $region20: #{tpu_custom_call.1} parent=1 // pred_region
      %72 = vst [vmem:[#allocation5] sm:$0x3] 0.0
      %73 = vst [vmem:[#allocation6] sm:$0x3] 0.0
    $region21: #{tpu_custom_call.1} parent=1 // pred_fallthru
      _
    %v74 = vld [vmem:[#allocation5] sm:$0x3]
    %v75 = vld [vmem:[#allocation6] sm:$0x3]
    %v76 = vld [vmem:[%s66] sm:$0x3]
    %v77 = vld [vmem:[#allocation2] sm:$0x3]
    %v78 = vld [vmem:[%s60] sm:$0x3]
    %v79 = vsub.f32 %v77, %v78
    %v80 = vmul.f32 %v79, %v76
    %v81 = vand.u32 2147483647, %v80
    %v82 = vadd.f32 %v74, %v81
    %v83 = vadd.f32 %v75, %v76
    %84 = vst [vmem:[#allocation5] sm:$0x3] %v82
    %85 = vst [vmem:[#allocation6] sm:$0x3] %v83
    // Predicated region
    $region22: #{tpu_custom_call.1} parent=1 // pred_check
      _
    $region23: #{tpu_custom_call.1} parent=1 // pred_check_branch
      %87 = sbr.rel (0) target = $region25
    $region24: #{tpu_custom_call.1} parent=1 // pred_region
      %s89 = ssub.s32 32, 32
      %90 = vsyncadd [#allocation4], %s89
      %s92 = sshll.u32 [#allocation5], 4
      %s93 = int_to_ptr.vmem [resolvable:$true] %s92
      %95 = dma.vmem_to_hbm [thread:$0]  %s93, 32, %s3, [#allocation4]
    $region25: #{tpu_custom_call.1} parent=1 // pred_fallthru
      _
    // Predicated region
    $region26: #{tpu_custom_call.1} parent=1 // pred_check
      _
    $region27: #{tpu_custom_call.1} parent=1 // pred_check_branch
      %97 = sbr.rel (0) target = $region29
    $region28: #{tpu_custom_call.1} parent=1 // pred_region
      %s99 = ssub.s32 32, 32
      %100 = vsyncadd [#allocation7], %s99
      %s102 = sshll.u32 [#allocation6], 4
      %s103 = int_to_ptr.vmem [resolvable:$true] %s102
      %105 = dma.vmem_to_hbm [thread:$0]  %s103, 32, %s4, [#allocation7]
    $region29: #{tpu_custom_call.1} parent=1 // pred_fallthru
      _
    // Predicated region
    $region30: #{tpu_custom_call.1} parent=1 // pred_check
      _
    $region31: #{tpu_custom_call.1} parent=1 // pred_check_branch
      %107 = sbr.rel (0) target = $region33
    $region32: #{tpu_custom_call.1} parent=1 // pred_region
      %108 = dma.done [#allocation4], 32
    $region33: #{tpu_custom_call.1} parent=1 // pred_fallthru
      _
    // Predicated region
    $region34: #{tpu_custom_call.1} parent=1 // pred_check
      _
    $region35: #{tpu_custom_call.1} parent=1 // pred_check_branch
      %110 = sbr.rel (0) target = $region37
    $region36: #{tpu_custom_call.1} parent=1 // pred_region
      %111 = dma.done [#allocation7], 32
    $region37: #{tpu_custom_call.1} parent=1 // pred_fallthru
      _
    %112 = vsyncpa [#allocation3], 1
    %113 = vsyncpa [#allocation4], 1
    %114 = vsyncpa [#allocation7], 1

</llo_original>
